<compile_context>
chip_gen: v5e
topology: v5e:2x2
jax: 0.10.0
libtpu: 0.0.40
codegen_flags: <defaults>
</compile_context>

<pallas_src>
import math

import jax
import jax.numpy as jnp
from jax.experimental import pallas as pl
from jax.experimental.pallas import tpu as pltpu


def _make_cd_kernel(H, W, K, lpad):
    HW = H * W
    c = (K - 1) // 2
    center = c * K + c

    def kernel(x_ref, w_ref, mask_ref, o_ref, ext_ref, stk_ref):
        # x_ref   : (1, Cin, H*W)        bf16, one batch element, spatial in lanes
        # w_ref   : (cout_t, K*K*Cin)    bf16 folded weights, contraction index p*Cin+ci
        # mask_ref: (K*K, H*W)           bf16 per-tap validity mask (1.0 / 0.0)
        # o_ref   : (1, cout_t, H*W)     lane-dense output block (input dtype)
        # ext_ref : (Cin, lpad+H*W+lpad) bf16 zero-extended flattened image (scratch)
        # stk_ref : (K*K*Cin, H*W)       bf16 stacked, masked RHS (scratch)
        Cin = x_ref.shape[1]

        # Build the stacked RHS once per batch element (co == 0); the scratch
        # persists across the (sequential) Cout-tile axis and is reused.
        @pl.when(pl.program_id(1) == 0)
        def _build_rhs():
            # Zero only the two halo strips (aligned (Cin, lpad) stores), then
            # drop the image in the middle with one aligned full-width store.
            ext_ref[:, :lpad] = jnp.zeros((Cin, lpad), ext_ref.dtype)
            ext_ref[:, lpad + HW:lpad + HW + lpad] = jnp.zeros((Cin, lpad),
                                                               ext_ref.dtype)
            ext_ref[:, lpad:lpad + HW] = x_ref[0]

            for kh in range(K):
                for kw in range(K):
                    p = kh * K + kw
                    s = (kh - c) * W + (kw - c)
                    # shifted[:, q] == x_flat[:, q + s]; out-of-image and
                    # row-wrapped positions are killed by the mask before the MXU.
                    win = ext_ref[:, lpad + s:lpad + s + HW]        # (Cin, H*W)
                    if p != center:                                  # centre mask == 1
                        win = win * mask_ref[p:p + 1, :]
                    stk_ref[p * Cin:(p + 1) * Cin, :] = win

        # Single MXU contraction over all taps*channels:
        # (cout_t, K*K*Cin) @ (K*K*Cin, H*W) with f32 accumulation.
        acc = jnp.dot(w_ref[...], stk_ref[...],
                      preferred_element_type=jnp.float32)
        o_ref[0] = acc.astype(o_ref.dtype)

    return kernel


def conv2d_cd(x_nchw, weight_oihw, theta=0.7):
    """Pallas implementation of Conv2d_cd.forward (stride=1, pad=1, groups=1, no bias)."""
    N, Cin, H, W = x_nchw.shape
    Cout, Cin_w, K, K2 = weight_oihw.shape
    assert Cin == Cin_w and K == K2
    c = (K - 1) // 2
    HW = H * W
    KKC = K * K * Cin

    # ---- fold the central-difference term into the centre tap (unconditional:
    #      theta == 0 adds zero; also works for a traced / learned theta) ----
    kernel_diff = jnp.sum(weight_oihw, axis=(2, 3))                  # (Cout, Cin)
    theta_arr = jnp.asarray(theta, weight_oihw.dtype)
    w_folded = weight_oihw.at[:, :, c, c].add(-theta_arr * kernel_diff)

    # Tap-major flattened weights: w2d[o, p*Cin + ci] = w_folded[o, ci, kh, kw].
    w2d = jnp.transpose(w_folded, (0, 2, 3, 1)).reshape(Cout, KKC)

    # ---- per-tap validity mask over flattened output positions (tiny const) ----
    hh = jnp.arange(H)[:, None]
    ww = jnp.arange(W)[None, :]
    rows = []
    for kh in range(K):
        for kw in range(K):
            dh, dw = kh - c, kw - c
            valid = ((hh + dh >= 0) & (hh + dh < H) &
                     (ww + dw >= 0) & (ww + dw < W))
            rows.append(valid.reshape(-1))
    mask = jnp.stack(rows, axis=0)                                   # (K*K, H*W)

    # ---- bf16 MXU operands, f32 accumulation; output keeps the input dtype ----
    compute_dtype = jnp.bfloat16
    x_flat = x_nchw.reshape(N, Cin, HW).astype(compute_dtype)
    w2d = w2d.astype(compute_dtype)
    mask = mask.astype(compute_dtype)

    # Cout tiling: sequential ("arbitrary") grid axis so the stacked RHS built at
    # co == 0 can be reused by later Cout tiles of the same batch element.
    cout_t = 128 if (Cout % 128 == 0) else Cout
    n_co = Cout // cout_t

    # Lane-aligned left/right extension covering the largest tap shift (c*W + c).
    lpad = ((c * W + c + 127) // 128) * 128
    ext_w = lpad + HW + lpad

    out_flat = pl.pallas_call(
        _make_cd_kernel(H, W, K, lpad),
        out_shape=jax.ShapeDtypeStruct((N, Cout, HW), x_nchw.dtype),
        grid_spec=pltpu.PrefetchScalarGridSpec(
            num_scalar_prefetch=0,
            grid=(N, n_co),
            in_specs=[
                pl.BlockSpec((1, Cin, HW), lambda b, co: (b, 0, 0)),
                pl.BlockSpec((cout_t, KKC), lambda b, co: (co, 0)),
                pl.BlockSpec((K * K, HW), lambda b, co: (0, 0)),
            ],
            out_specs=pl.BlockSpec((1, cout_t, HW), lambda b, co: (b, co, 0)),
            scratch_shapes=[
                pltpu.VMEM((Cin, ext_w), compute_dtype),
                pltpu.VMEM((KKC, HW), compute_dtype),
            ],
        ),
        compiler_params=pltpu.CompilerParams(
            dimension_semantics=("parallel", "arbitrary")),
    )(x_flat, w2d, mask)

    return out_flat.reshape(N, Cout, H, W)            # free reshape, still NCHW


def _reference(x_nchw, weight_oihw, theta):
    """Pure-JAX full-precision reference mirroring the PyTorch forward."""
    out_normal = jax.lax.conv_general_dilated(
        x_nchw, weight_oihw, window_strides=(1, 1),
        padding=((1, 1), (1, 1)),
        dimension_numbers=("NCHW", "OIHW", "NCHW"),
        precision=jax.lax.Precision.HIGHEST)
    if math.fabs(theta - 0.0) < 1e-8:
        return out_normal
    kernel_diff = jnp.sum(weight_oihw, axis=(2, 3))[:, :, None, None]
    out_diff = jax.lax.conv_general_dilated(
        x_nchw, kernel_diff, window_strides=(1, 1), padding="VALID",
        dimension_numbers=("NCHW", "OIHW", "NCHW"),
        precision=jax.lax.Precision.HIGHEST)
    return out_normal - theta * out_diff


def _reference_bf16(x_nchw, weight_oihw, theta):
    """Reference with the kernel's exact rounding: folded weights + inputs in bf16,
    products/accumulation in f32."""
    c = (weight_oihw.shape[2] - 1) // 2
    kernel_diff = jnp.sum(weight_oihw, axis=(2, 3))
    w_folded = weight_oihw.at[:, :, c, c].add(-theta * kernel_diff)
    xb = x_nchw.astype(jnp.bfloat16).astype(jnp.float32)
    wb = w_folded.astype(jnp.bfloat16).astype(jnp.float32)
    return jax.lax.conv_general_dilated(
        xb, wb, window_strides=(1, 1), padding=((1, 1), (1, 1)),
        dimension_numbers=("NCHW", "OIHW", "NCHW"),
        precision=jax.lax.Precision.HIGHEST)


if __name__ == "__main__":
    key = jax.random.PRNGKey(0)
    kx, kw_ = jax.random.split(key)

    # Small shapes consistent with the module: batch=2, Cin=4, Cout=8, H=W=16, K=3.
    N, Cin, Cout, H, W, K = 2, 4, 8, 16, 16, 3
    theta = 0.7

    x = jax.random.normal(kx, (N, Cin, H, W), dtype=jnp.float32)
    # Deterministic "Conv2d" weight init (kaiming-uniform-like bound), no bias.
    fan_in = Cin * K * K
    bound = 1.0 / math.sqrt(fan_in)
    weight = jax.random.uniform(kw_, (Cout, Cin, K, K),
                                minval=-bound, maxval=bound, dtype=jnp.float32)

    out = jax.block_until_ready(conv2d_cd(x, weight, theta=theta))
    assert out.shape == (N, Cout, H, W)

    # Tight structural check against a bf16-consistent reference
    # (kernel accumulates bf16 products exactly in f32 -> should match closely).
    ref_b = _reference_bf16(x, weight, theta)
    err_tight = float(jnp.max(jnp.abs(out - ref_b)))
    assert err_tight < 2e-3, f"bf16-consistent mismatch: {err_tight}"

    # Sanity check against the full-precision module semantics
    # (tolerance accounts for bf16 operand rounding).
    ref_f = _reference(x, weight, theta)
    err_loose = float(jnp.max(jnp.abs(out - ref_f)))
    assert err_loose < 8e-2, f"module-semantics mismatch: {err_loose}"

    print("KERNEL_OK")
</pallas_src>

<mosaic_0001>
module attributes {stable_mosaic.version = 11 : i64} {
  func.func @kernel(%arg0: i32, %arg1: i32, %arg2: memref<1x4x256xbf16, #tpu.memory_space<vmem>>, %arg3: memref<8x36xbf16, #tpu.memory_space<vmem>>, %arg4: memref<9x256xbf16, #tpu.memory_space<vmem>>, %arg5: memref<1x8x256xf32, #tpu.memory_space<vmem>>, %arg6: memref<4x512xbf16, #tpu.memory_space<vmem>>, %arg7: memref<36x256xbf16, #tpu.memory_space<vmem>>) attributes {dimension_semantics = [#tpu.dimension_semantics<parallel>, #tpu.dimension_semantics<arbitrary>], iteration_bounds = array<i64: 2, 1>, scalar_prefetch = 0 : i64, scratch_operands = 2 : i64, tpu.core_type = #tpu.core_type<tc>, window_params = [{transform_indices = @transform_0, window_bounds = array<i64: 1, 4, 256>}, {transform_indices = @transform_1, window_bounds = array<i64: 8, 36>}, {pipeline_mode = #tpu.pipeline_mode<synchronous>, transform_indices = @transform_2, window_bounds = array<i64: 9, 256>}, {transform_indices = @transform_3, window_bounds = array<i64: 1, 8, 256>}]} {
    %c0_i32 = arith.constant 0 : i32
    %0 = arith.cmpi eq, %arg1, %c0_i32 : i32
    %1 = arith.extui %0 : i1 to i32
    %c0_i32_0 = arith.constant 0 : i32
    %2 = arith.cmpi ne, %1, %c0_i32_0 : i32
    scf.if %2 {
      %cst_7 = arith.constant 0.000000e+00 : bf16
      %9 = vector.broadcast %cst_7 : bf16 to vector<4x128xbf16>
      %c0_8 = arith.constant 0 : index
      %c0_9 = arith.constant 0 : index
      %10 = vector.load %arg6[%c0_8, %c0_9] : memref<4x512xbf16, #tpu.memory_space<vmem>>, vector<4x128xbf16>
      tpu.vector_store %arg6[%c0_8, %c0_9], %9 {strides = array<i32>} : memref<4x512xbf16, #tpu.memory_space<vmem>>, vector<4x128xbf16>,
      %cst_10 = arith.constant 0.000000e+00 : bf16
      %11 = vector.broadcast %cst_10 : bf16 to vector<4x128xbf16>
      %c0_11 = arith.constant 0 : index
      %c384 = arith.constant 384 : index
      %12 = vector.load %arg6[%c0_11, %c384] : memref<4x512xbf16, #tpu.memory_space<vmem>>, vector<4x128xbf16>
      tpu.vector_store %arg6[%c0_11, %c384], %11 {strides = array<i32>} : memref<4x512xbf16, #tpu.memory_space<vmem>>, vector<4x128xbf16>,
      %c0_12 = arith.constant 0 : index
      %c0_13 = arith.constant 0 : index
      %c0_14 = arith.constant 0 : index
      %13 = vector.load %arg2[%c0_12, %c0_13, %c0_14] : memref<1x4x256xbf16, #tpu.memory_space<vmem>>, vector<1x4x256xbf16>
      %14 = vector.shape_cast %13 : vector<1x4x256xbf16> to vector<4x256xbf16>
      %c0_15 = arith.constant 0 : index
      %c128 = arith.constant 128 : index
      %15 = vector.load %arg6[%c0_15, %c128] : memref<4x512xbf16, #tpu.memory_space<vmem>>, vector<4x256xbf16>
      tpu.vector_store %arg6[%c0_15, %c128], %14 {strides = array<i32>} : memref<4x512xbf16, #tpu.memory_space<vmem>>, vector<4x256xbf16>,
      %c0_16 = arith.constant 0 : index
      %c111 = arith.constant 111 : index
      %16 = vector.load %arg6[%c0_16, %c111] : memref<4x512xbf16, #tpu.memory_space<vmem>>, vector<4x256xbf16>
      %c0_17 = arith.constant 0 : index
      %c0_18 = arith.constant 0 : index
      %17 = vector.load %arg4[%c0_17, %c0_18] : memref<9x256xbf16, #tpu.memory_space<vmem>>, vector<1x256xbf16>
      %18 = vector.broadcast %17 : vector<1x256xbf16> to vector<4x256xbf16>
      %19 = arith.mulf %16, %18 : vector<4x256xbf16>
      %c0_19 = arith.constant 0 : index
      %c0_20 = arith.constant 0 : index
      %20 = vector.load %arg7[%c0_19, %c0_20] : memref<36x256xbf16, #tpu.memory_space<vmem>>, vector<4x256xbf16>
      tpu.vector_store %arg7[%c0_19, %c0_20], %19 {strides = array<i32>} : memref<36x256xbf16, #tpu.memory_space<vmem>>, vector<4x256xbf16>,
      %c0_21 = arith.constant 0 : index
      %c112 = arith.constant 112 : index
      %21 = vector.load %arg6[%c0_21, %c112] : memref<4x512xbf16, #tpu.memory_space<vmem>>, vector<4x256xbf16>
      %c1 = arith.constant 1 : index
      %c0_22 = arith.constant 0 : index
      %22 = vector.load %arg4[%c1, %c0_22] : memref<9x256xbf16, #tpu.memory_space<vmem>>, vector<1x256xbf16>
      %23 = vector.broadcast %22 : vector<1x256xbf16> to vector<4x256xbf16>
      %24 = arith.mulf %21, %23 : vector<4x256xbf16>
      %c4 = arith.constant 4 : index
      %c0_23 = arith.constant 0 : index
      %25 = vector.load %arg7[%c4, %c0_23] : memref<36x256xbf16, #tpu.memory_space<vmem>>, vector<4x256xbf16>
      tpu.vector_store %arg7[%c4, %c0_23], %24 {strides = array<i32>} : memref<36x256xbf16, #tpu.memory_space<vmem>>, vector<4x256xbf16>,
      %c0_24 = arith.constant 0 : index
      %c113 = arith.constant 113 : index
      %26 = vector.load %arg6[%c0_24, %c113] : memref<4x512xbf16, #tpu.memory_space<vmem>>, vector<4x256xbf16>
      %c2 = arith.constant 2 : index
      %c0_25 = arith.constant 0 : index
      %27 = vector.load %arg4[%c2, %c0_25] : memref<9x256xbf16, #tpu.memory_space<vmem>>, vector<1x256xbf16>
      %28 = vector.broadcast %27 : vector<1x256xbf16> to vector<4x256xbf16>
      %29 = arith.mulf %26, %28 : vector<4x256xbf16>
      %c8 = arith.constant 8 : index
      %c0_26 = arith.constant 0 : index
      %30 = vector.load %arg7[%c8, %c0_26] : memref<36x256xbf16, #tpu.memory_space<vmem>>, vector<4x256xbf16>
      tpu.vector_store %arg7[%c8, %c0_26], %29 {strides = array<i32>} : memref<36x256xbf16, #tpu.memory_space<vmem>>, vector<4x256xbf16>,
      %c0_27 = arith.constant 0 : index
      %c127 = arith.constant 127 : index
      %31 = vector.load %arg6[%c0_27, %c127] : memref<4x512xbf16, #tpu.memory_space<vmem>>, vector<4x256xbf16>
      %c3 = arith.constant 3 : index
      %c0_28 = arith.constant 0 : index
      %32 = vector.load %arg4[%c3, %c0_28] : memref<9x256xbf16, #tpu.memory_space<vmem>>, vector<1x256xbf16>
      %33 = vector.broadcast %32 : vector<1x256xbf16> to vector<4x256xbf16>
      %34 = arith.mulf %31, %33 : vector<4x256xbf16>
      %c12 = arith.constant 12 : index
      %c0_29 = arith.constant 0 : index
      %35 = vector.load %arg7[%c12, %c0_29] : memref<36x256xbf16, #tpu.memory_space<vmem>>, vector<4x256xbf16>
      tpu.vector_store %arg7[%c12, %c0_29], %34 {strides = array<i32>} : memref<36x256xbf16, #tpu.memory_space<vmem>>, vector<4x256xbf16>,
      %c0_30 = arith.constant 0 : index
      %c128_31 = arith.constant 128 : index
      %36 = vector.load %arg6[%c0_30, %c128_31] : memref<4x512xbf16, #tpu.memory_space<vmem>>, vector<4x256xbf16>
      %c16 = arith.constant 16 : index
      %c0_32 = arith.constant 0 : index
      %37 = vector.load %arg7[%c16, %c0_32] : memref<36x256xbf16, #tpu.memory_space<vmem>>, vector<4x256xbf16>
      tpu.vector_store %arg7[%c16, %c0_32], %36 {strides = array<i32>} : memref<36x256xbf16, #tpu.memory_space<vmem>>, vector<4x256xbf16>,
      %c0_33 = arith.constant 0 : index
      %c129 = arith.constant 129 : index
      %38 = vector.load %arg6[%c0_33, %c129] : memref<4x512xbf16, #tpu.memory_space<vmem>>, vector<4x256xbf16>
      %c5 = arith.constant 5 : index
      %c0_34 = arith.constant 0 : index
      %39 = vector.load %arg4[%c5, %c0_34] : memref<9x256xbf16, #tpu.memory_space<vmem>>, vector<1x256xbf16>
      %40 = vector.broadcast %39 : vector<1x256xbf16> to vector<4x256xbf16>
      %41 = arith.mulf %38, %40 : vector<4x256xbf16>
      %c20 = arith.constant 20 : index
      %c0_35 = arith.constant 0 : index
      %42 = vector.load %arg7[%c20, %c0_35] : memref<36x256xbf16, #tpu.memory_space<vmem>>, vector<4x256xbf16>
      tpu.vector_store %arg7[%c20, %c0_35], %41 {strides = array<i32>} : memref<36x256xbf16, #tpu.memory_space<vmem>>, vector<4x256xbf16>,
      %c0_36 = arith.constant 0 : index
      %c143 = arith.constant 143 : index
      %43 = vector.load %arg6[%c0_36, %c143] : memref<4x512xbf16, #tpu.memory_space<vmem>>, vector<4x256xbf16>
      %c6 = arith.constant 6 : index
      %c0_37 = arith.constant 0 : index
      %44 = vector.load %arg4[%c6, %c0_37] : memref<9x256xbf16, #tpu.memory_space<vmem>>, vector<1x256xbf16>
      %45 = vector.broadcast %44 : vector<1x256xbf16> to vector<4x256xbf16>
      %46 = arith.mulf %43, %45 : vector<4x256xbf16>
      %c24 = arith.constant 24 : index
      %c0_38 = arith.constant 0 : index
      %47 = vector.load %arg7[%c24, %c0_38] : memref<36x256xbf16, #tpu.memory_space<vmem>>, vector<4x256xbf16>
      tpu.vector_store %arg7[%c24, %c0_38], %46 {strides = array<i32>} : memref<36x256xbf16, #tpu.memory_space<vmem>>, vector<4x256xbf16>,
      %c0_39 = arith.constant 0 : index
      %c144 = arith.constant 144 : index
      %48 = vector.load %arg6[%c0_39, %c144] : memref<4x512xbf16, #tpu.memory_space<vmem>>, vector<4x256xbf16>
      %c7 = arith.constant 7 : index
      %c0_40 = arith.constant 0 : index
      %49 = vector.load %arg4[%c7, %c0_40] : memref<9x256xbf16, #tpu.memory_space<vmem>>, vector<1x256xbf16>
      %50 = vector.broadcast %49 : vector<1x256xbf16> to vector<4x256xbf16>
      %51 = arith.mulf %48, %50 : vector<4x256xbf16>
      %c28 = arith.constant 28 : index
      %c0_41 = arith.constant 0 : index
      %52 = vector.load %arg7[%c28, %c0_41] : memref<36x256xbf16, #tpu.memory_space<vmem>>, vector<4x256xbf16>
      tpu.vector_store %arg7[%c28, %c0_41], %51 {strides = array<i32>} : memref<36x256xbf16, #tpu.memory_space<vmem>>, vector<4x256xbf16>,
      %c0_42 = arith.constant 0 : index
      %c145 = arith.constant 145 : index
      %53 = vector.load %arg6[%c0_42, %c145] : memref<4x512xbf16, #tpu.memory_space<vmem>>, vector<4x256xbf16>
      %c8_43 = arith.constant 8 : index
      %c0_44 = arith.constant 0 : index
      %54 = vector.load %arg4[%c8_43, %c0_44] : memref<9x256xbf16, #tpu.memory_space<vmem>>, vector<1x256xbf16>
      %55 = vector.broadcast %54 : vector<1x256xbf16> to vector<4x256xbf16>
      %56 = arith.mulf %53, %55 : vector<4x256xbf16>
      %c32 = arith.constant 32 : index
      %c0_45 = arith.constant 0 : index
      %57 = vector.load %arg7[%c32, %c0_45] : memref<36x256xbf16, #tpu.memory_space<vmem>>, vector<4x256xbf16>
      tpu.vector_store %arg7[%c32, %c0_45], %56 {strides = array<i32>} : memref<36x256xbf16, #tpu.memory_space<vmem>>, vector<4x256xbf16>,
    } else {
    }
    %c0 = arith.constant 0 : index
    %c0_1 = arith.constant 0 : index
    %3 = vector.load %arg3[%c0, %c0_1] : memref<8x36xbf16, #tpu.memory_space<vmem>>, vector<8x36xbf16>
    %c0_2 = arith.constant 0 : index
    %c0_3 = arith.constant 0 : index
    %4 = vector.load %arg7[%c0_2, %c0_3] : memref<36x256xbf16, #tpu.memory_space<vmem>>, vector<36x256xbf16>
    %cst = arith.constant dense<0.000000e+00> : vector<8x256xf32>
    %5 = tpu.matmul %3, %4, %cst {dimension_numbers = #tpu.dot_dimension_numbers<[1], [0], [0], [1], [0, 0, 1, 1], [], []>} : vector<8x36xbf16>, vector<36x256xbf16>, vector<8x256xf32> -> vector<8x256xf32>
    %c0_4 = arith.constant 0 : index
    %c0_5 = arith.constant 0 : index
    %c0_6 = arith.constant 0 : index
    %6 = vector.load %arg5[%c0_4, %c0_5, %c0_6] : memref<1x8x256xf32, #tpu.memory_space<vmem>>, vector<1x8x256xf32>
    %7 = vector.shape_cast %6 : vector<1x8x256xf32> to vector<8x256xf32>
    %8 = vector.shape_cast %5 : vector<8x256xf32> to vector<1x8x256xf32>
    tpu.vector_store %arg5[%c0_4, %c0_5, %c0_6], %8 {strides = array<i32>} : memref<1x8x256xf32, #tpu.memory_space<vmem>>, vector<1x8x256xf32>,
    return
  }
  func.func @transform_0(%arg0: i32, %arg1: i32) -> (i32, i32, i32) {
    %c0_i32 = arith.constant 0 : i32
    %c0_i32_0 = arith.constant 0 : i32
    %c0_i32_1 = arith.constant 0 : i32
    return %arg0, %c0_i32, %c0_i32_0 : i32, i32, i32
  }
  func.func @transform_1(%arg0: i32, %arg1: i32) -> (i32, i32) {
    %c0_i32 = arith.constant 0 : i32
    %c0_i32_0 = arith.constant 0 : i32
    return %arg1, %c0_i32 : i32, i32
  }
  func.func @transform_2(%arg0: i32, %arg1: i32) -> (i32, i32) {
    %c0_i32 = arith.constant 0 : i32
    %c0_i32_0 = arith.constant 0 : i32
    %c0_i32_1 = arith.constant 0 : i32
    return %c0_i32, %c0_i32_0 : i32, i32
  }
  func.func @transform_3(%arg0: i32, %arg1: i32) -> (i32, i32, i32) {
    %c0_i32 = arith.constant 0 : i32
    %c0_i32_0 = arith.constant 0 : i32
    return %arg0, %arg1, %c0_i32 : i32, i32, i32
  }
}

</mosaic_0001>

<llo_original>
// kernel: tpu_custom_call.1
$region0: #{tpu_custom_call.1}
  #allocation0 [shape = 'u32[]', space=smem, size = 0x4, offset = 0x4, fixed_abs, tag = 'smem constant byte address 0x4 - core index']
  #allocation1 [shape = 'u32[72,128]{1,0:T(1,128)}', space=vmem, size = 0x9000, scoped, tag = 'internal scratch']
  #allocation2 [shape = 'bf16[4,512]{1,0:T(4,128)(2,1)}', space=vmem, size = 0x1000, scoped, tag = 'scratch operand']
  #allocation3 [shape = 'bf16[36,256]{1,0:T(8,128)(2,1)}', space=vmem, size = 0x5000, scoped, tag = 'scratch operand']
  %s0 = inlined_call_operand.hbm [shape: bf16[2,4,256], index: 0, kind: input, shape index: {}]
  %s1 = inlined_call_operand.hbm [shape: bf16[8,36], index: 1, kind: input, shape index: {}]
  %s2 = inlined_call_operand.hbm [shape: bf16[9,256], index: 2, kind: input, shape index: {}]
  %s3 = inlined_call_operand.hbm [shape: f32[2,8,256], index: 3, kind: output, shape index: {}]
  %s4 = sld [smem:[#allocation0]]
  $region61: #{tpu_custom_call.1} parent=0
    _
  %s6 = ssub.s32 1, %s4
  %s7 = scalar_select 0, %s6, %s4
  $region1: #{tpu_custom_call.1} parent=0
    #allocation4 [shape = 'u8[4096]{0}', space=vmem, size = 0x1000, scoped, tag = 'input window, operand 0']
    #allocation5 [shape = 's32[2]{0}', space=sflag, size = 0x8, scoped, tag = 'scoped memory for tpu_custom_call.1']
    #allocation6 [shape = 's32[2]{0}', space=sflag, size = 0x8, scoped, tag = 'scoped memory for tpu_custom_call.1']
    #allocation7 [shape = 'u8[2048]{0}', space=vmem, size = 0x800, scoped, tag = 'input window, operand 1, single buffered']
    #allocation8 [shape = 's32[1]{0}', space=sflag, size = 0x4, scoped, tag = 'scoped memory for tpu_custom_call.1']
    #allocation9 [shape = 'u8[8192]{0}', space=vmem, size = 0x2000, scoped, tag = 'input window, operand 2, single buffered']
    #allocation10 [shape = 'u8[16384]{0}', space=vmem, size = 0x4000, scoped, tag = 'output window, operand 0']
    %8 = vsyncpa [#allocation5], 0
    %s9 = scalar_lea.sflag [#allocation5], 1
    %10 = vsyncpa %s9, 0
    %11 = vsyncpa [#allocation8], 0
    %12 = vsyncpa [#allocation6], 0
    %s13 = scalar_lea.sflag [#allocation6], 1
    %14 = vsyncpa %s13, 0
    loop: start=0, step=1, limit=4
    $region2: #{tpu_custom_call.1} parent=1 // loop_pre_header
      _
    $region3: #{tpu_custom_call.1} parent=1 // loop_header
      %s16 = sphi 0, %s20
      %p17 = scmp.ge.s32.totalorder %s16, 4
      %s23 = sphi 0, %s35
      %s24 = sphi 0, %s31
      %s25 = sphi 0, %s23
      %s26 = sphi 0, %s24
      %s27 = sphi 0, %s25
      %s28 = sphi 0, %s26
      %s38 = sphi 0, %s40
      %s41 = sphi 0, %s38
      %s42 = sphi 0, %s41
      %s58 = sphi 0, %s42
      %s64 = sphi 0, %s66
      %s67 = sphi 0, %s64
      %s68 = sphi 0, %s67
      %s84 = sphi 0, %s68
      %s88 = sphi 0, %s88
      %s90 = sphi 0, %s88
      %s91 = sphi 0, %s90
      %s105 = sphi 0, %s91
      %s113 = sphi 0, %s115
      %s116 = sphi 0, %s113
      %s117 = sphi 0, %s116
      %s133 = sphi 0, %s117
    $region4: #{tpu_custom_call.1} parent=1 // loop_header_branch
      %19 = sbr.rel (%p17) target = $region8
    $region5: #{tpu_custom_call.1} parent=1 // loop_body
      %s21 = ssub.s32 %s16, 1
      %s22 = ssub.s32 %s16, 2
      %s29 = sadd.s32 1, %s24
      %p30 = scmp.ge.s32.totalorder %s29, 1
      %s31 = scalar_select %p30, 0, %s29
      %s32 = sadd.s32 1, %s23
      %s33 = scalar_select %p30, %s32, %s23
      %p34 = scmp.ge.s32.totalorder %s33, 2
      %s35 = scalar_select %p34, 0, %s33
      %s36 = ssub.s32 %s23, %s35
      %p37 = scmp.eq.s32.totalorder %s36, 0
      %s39 = sadd.s32 %s38, 1
      %s40 = scalar_select %p37, %s38, %s39
      %p43 = pneg %p37
      %p44 = scmp.eq.s32.totalorder %s16, 1
      %p45 = por %p43, %p44
      %p46 = scmp.ne.s32.totalorder %s38, %s41
      %p47 = scmp.eq.s32.totalorder %s16, 0
      %p48 = por %p46, %p47
      %p49 = scmp.ne.s32.totalorder %s38, %s41
      %p50 = scmp.eq.s32.totalorder %s21, 1
      %p51 = por %p49, %p50
      %p52 = scmp.ne.s32.totalorder %s41, %s42
      %p53 = scmp.eq.s32.totalorder %s21, 0
      %p54 = por %p52, %p53
      %p55 = scmp.ne.s32.totalorder %s41, %s42
      %p56 = scmp.eq.s32.totalorder %s22, 1
      %p57 = por %p55, %p56
      %p59 = scmp.ne.s32.totalorder %s42, %s58
      %p60 = scmp.eq.s32.totalorder %s22, 0
      %p61 = por %p59, %p60
      %s62 = ssub.s32 %s24, %s31
      %p63 = scmp.eq.s32.totalorder %s62, 0
      %s65 = sadd.s32 %s64, 1
      %s66 = scalar_select %p63, %s64, %s65
      %p69 = pneg %p63
      %p70 = scmp.eq.s32.totalorder %s16, 1
      %p71 = por %p69, %p70
      %p72 = scmp.ne.s32.totalorder %s64, %s67
      %p73 = scmp.eq.s32.totalorder %s16, 0
      %p74 = por %p72, %p73
      %p75 = scmp.ne.s32.totalorder %s64, %s67
      %p76 = scmp.eq.s32.totalorder %s21, 1
      %p77 = por %p75, %p76
      %p78 = scmp.ne.s32.totalorder %s67, %s68
      %p79 = scmp.eq.s32.totalorder %s21, 0
      %p80 = por %p78, %p79
      %p81 = scmp.ne.s32.totalorder %s67, %s68
      %p82 = scmp.eq.s32.totalorder %s22, 1
      %p83 = por %p81, %p82
      %p85 = scmp.ne.s32.totalorder %s68, %s84
      %p86 = scmp.eq.s32.totalorder %s22, 0
      %p87 = por %p85, %p86
      %s89 = sadd.s32 %s88, 1
      %p92 = scmp.eq.s32.totalorder %s16, 1
      %p93 = scmp.ne.s32.totalorder %s88, %s90
      %p94 = scmp.eq.s32.totalorder %s16, 0
      %p95 = por %p93, %p94
      %p96 = scmp.ne.s32.totalorder %s88, %s90
      %p97 = scmp.eq.s32.totalorder %s21, 1
      %p98 = por %p96, %p97
      %p99 = scmp.ne.s32.totalorder %s90, %s91
      %p100 = scmp.eq.s32.totalorder %s21, 0
      %p101 = por %p99, %p100
      %p102 = scmp.ne.s32.totalorder %s90, %s91
      %p103 = scmp.eq.s32.totalorder %s22, 1
      %p104 = por %p102, %p103
      %p106 = scmp.ne.s32.totalorder %s91, %s105
      %p107 = scmp.eq.s32.totalorder %s22, 0
      %p108 = por %p106, %p107
      %s109 = ssub.s32 %s23, %s35
      %s110 = ssub.s32 %s24, %s31
      %s111 = sor.u32 %s109, %s110
      %p112 = scmp.eq.s32.totalorder %s111, 0
      %s114 = sadd.s32 %s113, 1
      %s115 = scalar_select %p112, %s113, %s114
      %p118 = pneg %p112
      %p119 = scmp.eq.s32.totalorder %s16, 1
      %p120 = por %p118, %p119
      %p121 = scmp.ne.s32.totalorder %s113, %s116
      %p122 = scmp.eq.s32.totalorder %s16, 0
      %p123 = por %p121, %p122
      %p124 = scmp.ne.s32.totalorder %s113, %s116
      %p125 = scmp.eq.s32.totalorder %s21, 1
      %p126 = por %p124, %p125
      %p127 = scmp.ne.s32.totalorder %s116, %s117
      %p128 = scmp.eq.s32.totalorder %s21, 0
      %p129 = por %p127, %p128
      %p130 = scmp.ne.s32.totalorder %s116, %s117
      %p131 = scmp.eq.s32.totalorder %s22, 1
      %p132 = por %p130, %p131
      %p134 = scmp.ne.s32.totalorder %s117, %s133
      %p135 = scmp.eq.s32.totalorder %s22, 0
      %p136 = por %p134, %p135
      %p137 = scmp.le.s32.totalorder 1, %s16
      %p138 = scmp.lt.s32.totalorder %s16, 3
      %p139 = pnand %p137, %p138
      %p140 = pneg %p139
      // Predicated region
      $region9: #{tpu_custom_call.1} parent=5 // pred_check
        _
      $region10: #{tpu_custom_call.1} parent=5 // pred_check_branch
        %142 = sbr.rel (%p139) target = $region12
      $region11: #{tpu_custom_call.1} parent=5 // pred_region
        %s143 = ssub.s32 %s16, 1
        // Predicated region
        $region13: #{tpu_custom_call.1} parent=11 // pred_check
          %p144 = pneg %p80
        $region14: #{tpu_custom_call.1} parent=11 // pred_check_branch
          %146 = sbr.rel (%p144) target = $region16
        $region15: #{tpu_custom_call.1} parent=11 // pred_region
          %148 = vsyncadd [#allocation8], 0
          %s149 = smul.addr %s26, 4
          %s150 = scalar_lea.hbm %s1, %s149
          %s152 = sshll.u32 %s150, 4
          %s153 = int_to_ptr.hbm [resolvable:$true] %s152
          %s154 = sshll.u32 [#allocation7], 4
          %s155 = int_to_ptr.vmem [resolvable:$true] %s154
          %157 = dma.hbm_to_vmem [thread:$0]  %s153, 64, %s155, [#allocation8]
        $region16: #{tpu_custom_call.1} parent=11 // pred_fallthru
          _
        // Predicated region
        $region17: #{tpu_custom_call.1} parent=11 // pred_check
          %p158 = pneg %p101
        $region18: #{tpu_custom_call.1} parent=11 // pred_check_branch
          %160 = sbr.rel (%p158) target = $region20
        $region19: #{tpu_custom_call.1} parent=11 // pred_region
          %162 = vsyncadd [#allocation8], 0
          %s163 = sshll.u32 %s2, 4
          %s164 = int_to_ptr.hbm [resolvable:$true] %s163
          %s165 = sshll.u32 [#allocation9], 4
          %s166 = int_to_ptr.vmem [resolvable:$true] %s165
          %171 = dma.hbm_to_vmem [thread:$0]  %s164, 256, %s166, [#allocation8], 128, 128, 8
        $region20: #{tpu_custom_call.1} parent=11 // pred_fallthru
          _
      $region12: #{tpu_custom_call.1} parent=5 // pred_fallthru
        _
      %p172 = scmp.lt.s32.totalorder %s16, 2
      // Predicated region
      $region21: #{tpu_custom_call.1} parent=5 // pred_check
        %p173 = pneg %p172
      $region22: #{tpu_custom_call.1} parent=5 // pred_check_branch
        %175 = sbr.rel (%p173) target = $region24
      $region23: #{tpu_custom_call.1} parent=5 // pred_region
        // Predicated region
        $region25: #{tpu_custom_call.1} parent=23 // pred_check
          %p176 = pneg %p48
        $region26: #{tpu_custom_call.1} parent=23 // pred_check_branch
          %178 = sbr.rel (%p176) target = $region28
        $region27: #{tpu_custom_call.1} parent=23 // pred_region
          %s179 = sand.u32 %s38, 1
          %s180 = scalar_lea.sflag [#allocation5], %s179
          %s181 = sand.u32 %s38, 1
          %s182 = smul.addr %s181, 4
          %s183 = scalar_lea.vmem [#allocation4], %s182
          %185 = vsyncadd %s180, 0
          %s186 = smul.addr %s23, 2
          %s187 = smul.addr %s186, 2
          %s188 = scalar_lea.hbm %s0, %s187
          %s190 = sshll.u32 %s188, 4
          %s191 = int_to_ptr.hbm [resolvable:$true] %s190
          %s192 = sshll.u32 %s183, 4
          %s193 = int_to_ptr.vmem [resolvable:$true] %s192
          %195 = dma.hbm_to_vmem [thread:$0]  %s191, 64, %s193, %s180
        $region28: #{tpu_custom_call.1} parent=23 // pred_fallthru
          _
      $region24: #{tpu_custom_call.1} parent=5 // pred_fallthru
        _
      %p196 = scmp.le.s32.totalorder 1, %s16
      %p197 = scmp.lt.s32.totalorder %s16, 3
      %p198 = pnand %p196, %p197
      %p199 = pneg %p198
      // Predicated region
      $region29: #{tpu_custom_call.1} parent=5 // pred_check
        _
      $region30: #{tpu_custom_call.1} parent=5 // pred_check_branch
        %201 = sbr.rel (%p198) target = $region32
      $region31: #{tpu_custom_call.1} parent=5 // pred_region
        %s202 = ssub.s32 %s16, 1
        %s203 = sand.u32 %s41, 1
        %s204 = scalar_lea.sflag [#allocation5], %s203
        %s205 = sand.u32 %s41, 1
        %s206 = smul.addr %s205, 4
        %s207 = scalar_lea.vmem [#allocation4], %s206
        // Predicated region
        $region33: #{tpu_custom_call.1} parent=31 // pred_check
          %p208 = pneg %p54
        $region34: #{tpu_custom_call.1} parent=31 // pred_check_branch
          %210 = sbr.rel (%p208) target = $region36
        $region35: #{tpu_custom_call.1} parent=31 // pred_region
          %212 = dma.done %s204, 64
        $region36: #{tpu_custom_call.1} parent=31 // pred_fallthru
          _
        // Predicated region
        $region37: #{tpu_custom_call.1} parent=31 // pred_check
          %p213 = pneg %p80
        $region38: #{tpu_custom_call.1} parent=31 // pred_check_branch
          %215 = sbr.rel (%p213) target = $region40
        $region39: #{tpu_custom_call.1} parent=31 // pred_region
          %217 = dma.done [#allocation8], 64
        $region40: #{tpu_custom_call.1} parent=31 // pred_fallthru
          _
        // Predicated region
        $region41: #{tpu_custom_call.1} parent=31 // pred_check
          %p218 = pneg %p101
        $region42: #{tpu_custom_call.1} parent=31 // pred_check_branch
          %220 = sbr.rel (%p218) target = $region44
        $region43: #{tpu_custom_call.1} parent=31 // pred_region
          %222 = dma.done [#allocation8], 256
        $region44: #{tpu_custom_call.1} parent=31 // pred_fallthru
          _
        %s223 = sand.u32 %s41, 1
        %s224 = scalar_lea.sflag [#allocation5], %s223
        %s225 = sand.u32 %s41, 1
        %s226 = smul.addr %s225, 4
        %s227 = scalar_lea.vmem [#allocation4], %s226
        %p228 = pneg %p54
        %p229 = pneg %p51
        %p230 = pneg %p80
        %p231 = pneg %p77
        %p232 = pneg %p101
        %p233 = pneg %p98
        %p234 = pneg %p129
        %p235 = pneg %p126
        %s236 = sand.u32 %s116, 1
        %s237 = scalar_lea.sflag [#allocation6], %s236
        %s238 = sand.u32 %s116, 1
        %s239 = smul.addr %s238, 16
        %s240 = scalar_lea.vmem [#allocation10], %s239
        %p242 = scmp.eq.s32.totalorder %s26, 0
        // Predicated region
        $region45: #{tpu_custom_call.1} parent=31 // pred_check
          %p243 = pneg %p242
        $region46: #{tpu_custom_call.1} parent=31 // pred_check_branch
          %245 = sbr.rel (%p243) target = $region48
        $region47: #{tpu_custom_call.1} parent=31 // pred_region
          %246 = vst [vmem:[#allocation2] sm:$0x3] 0
          %247 = vst [vmem:[#allocation2 + $0x6] sm:$0x3] 0
          %v248 = vld [vmem:[%s207] sm:$0xf]
          %249 = vst [vmem:[#allocation2 + $0x2] sm:$0xf] %v248
          %v250 = vld [vmem:[#allocation2] sm:$0x3f]
          %v251 = vld [vmem:[#allocation9] sm:$0x11]
          %v253 = vunpack.c.l.b16 %v251
          %v254 = vunpack.c.h.b16 %v251
          %v255 = vpack.c.b16 %v253, %v253
          %v256 = vpack.c.b16 %v254, %v254
          %v258 = vpack.i.b16 %v255, %v255
          %v260 = vperm.slane %v258, 0
          %v262 = vpack.i.b16 %v256, %v256
          %v264 = vperm.slane %v262, 0
          %v265 = vunpack.c.l.bf16 %v250
          %v266 = vunpack.c.h.bf16 %v250
          %v267 = vunpack.c.l.bf16 %v260
          %v268 = vunpack.c.l.bf16 %v264
          %v271 = vrot.slane %v268, 4
          %vm272 = vcmask 1043456
          %v273 = vsel %vm272, %v267, %v271
          %274 = vrot.lane.b32.xlu0 %v273, 111
          %v275 = vpop.permute.xlu0 %274
          %v276 = vrot.slane %v275, 4
          %vm277 = vcmask 908288
          %v278 = vsel %vm277, %v276, %v275
          %v281 = vmul.f32 %v265, %v278
          %v282 = vmul.f32 %v266, %v276
          %285 = vst [vmem:[#allocation1] ss:$2 sm:$0xff] %v281
          %s286 = scalar_lea.vmem [#allocation1], 16
          %287 = vst [vmem:[%s286] ss:$2 sm:$0xff] %v282
          %v288 = vld.sshfl [vmem:[#allocation1] sm:$0xff pattern:$0x75316420]
          %v289 = vld.sshfl [vmem:[#allocation1 + $0x8] sm:$0xff pattern:$0x75316420]
          %v290 = vld.sshfl [vmem:[#allocation1 + $0x10] sm:$0xff pattern:$0x75316420]
          %v294 = vpack.c.bf16 %v289, %v288
          %v295 = vpack.c.bf16 %v290, %v290
          %298 = vrot.lane.b32.xlu0 %v294, 17
          %v299 = vpop.permute.xlu0 %298
          %300 = vrot.lane.b32.xlu0 %v295, 17
          %v301 = vpop.permute.xlu0 %300
          %v302 = vrot.slane %v299, 4
          %v303 = vrot.slane %v301, 4
          %vm304 = vcmask 1043456
          %v305 = vsel %vm304, %v302, %v303
          %vm306 = vcmask 138240
          %v307 = vsel %vm306, %v299, %v305
          %309 = vst [vmem:[#allocation3] sm:$0x33] %v307
          %v310 = vld [vmem:[#allocation2] sm:$0x3f]
          %v311 = vld [vmem:[#allocation9] sm:$0x11]
          %v313 = vunpack.c.l.b16 %v311
          %v314 = vunpack.c.h.b16 %v311
          %v315 = vpack.c.b16 %v313, %v313
          %v316 = vpack.c.b16 %v314, %v314
          %v318 = vshrl.u32 %v315, 16
          %v319 = vpack.i.b16 %v318, %v318
          %v321 = vperm.slane %v319, 0
          %v323 = vshrl.u32 %v316, 16
          %v324 = vpack.i.b16 %v323, %v323
          %v326 = vperm.slane %v324, 0
          %v327 = vunpack.c.l.bf16 %v310
          %v328 = vunpack.c.h.bf16 %v310
          %v329 = vunpack.c.l.bf16 %v321
          %v330 = vunpack.c.l.bf16 %v326
          %v333 = vrot.slane %v330, 4
          %v334 = vsel %vm272, %v329, %v333
          %335 = vrot.lane.b32.xlu0 %v334, 112
          %v336 = vpop.permute.xlu0 %335
          %v337 = vrot.slane %v336, 4
          %vm338 = vcmask 916480
          %v339 = vsel %vm338, %v337, %v336
          %v342 = vmul.f32 %v327, %v339
          %v343 = vmul.f32 %v328, %v337
          %346 = vst [vmem:[#allocation1] ss:$2 sm:$0xff] %v342
          %s347 = scalar_lea.vmem [#allocation1], 16
          %348 = vst [vmem:[%s347] ss:$2 sm:$0xff] %v343
          %v349 = vld.sshfl [vmem:[#allocation1] sm:$0xff pattern:$0x75316420]
          %v350 = vld.sshfl [vmem:[#allocation1 + $0x8] sm:$0xff pattern:$0x75316420]
          %v351 = vld.sshfl [vmem:[#allocation1 + $0x10] sm:$0xff pattern:$0x75316420]
          %v355 = vpack.c.bf16 %v350, %v349
          %v356 = vpack.c.bf16 %v351, %v351
          %v359 = vrot.slane %v355, 6
          %v360 = vrot.slane %v356, 6
          %361 = vrot.lane.b32.xlu0 %v359, 16
          %v362 = vpop.permute.xlu0 %361
          %363 = vrot.lane.b32.xlu0 %v360, 16
          %v364 = vpop.permute.xlu0 %363
          %v365 = vrot.slane %v362, 4
          %v366 = vrot.slane %v364, 4
          %v367 = vsel %vm304, %v365, %v366
          %vm368 = vcmask 130048
          %v369 = vsel %vm368, %v362, %v367
          %371 = vst [vmem:[#allocation3] sm:$0xcc] %v369
          %v372 = vld [vmem:[#allocation2] sm:$0x3f]
          %v373 = vld [vmem:[#allocation9] sm:$0x22]
          %v375 = vunpack.c.l.b16 %v373
          %v376 = vunpack.c.h.b16 %v373
          %v377 = vpack.c.b16 %v375, %v375
          %v378 = vpack.c.b16 %v376, %v376
          %v380 = vpack.i.b16 %v377, %v377
          %v382 = vperm.slane %v380, 1
          %v384 = vpack.i.b16 %v378, %v378
          %v386 = vperm.slane %v384, 1
          %v387 = vunpack.c.l.bf16 %v372
          %v388 = vunpack.c.h.bf16 %v372
          %v389 = vunpack.c.l.bf16 %v382
          %v390 = vunpack.c.l.bf16 %v386
          %v393 = vrot.slane %v390, 4
          %v394 = vsel %vm272, %v389, %v393
          %395 = vrot.lane.b32.xlu0 %v394, 113
          %v396 = vpop.permute.xlu0 %395
          %v397 = vrot.slane %v396, 4
          %vm398 = vcmask 924672
          %v399 = vsel %vm398, %v397, %v396
          %v402 = vmul.f32 %v387, %v399
          %v403 = vmul.f32 %v388, %v397
          %406 = vst [vmem:[#allocation1] ss:$2 sm:$0xff] %v402
          %s407 = scalar_lea.vmem [#allocation1], 16
          %408 = vst [vmem:[%s407] ss:$2 sm:$0xff] %v403
          %v409 = vld.sshfl [vmem:[#allocation1] sm:$0xff pattern:$0x75316420]
          %v410 = vld.sshfl [vmem:[#allocation1 + $0x8] sm:$0xff pattern:$0x75316420]
          %v411 = vld.sshfl [vmem:[#allocation1 + $0x10] sm:$0xff pattern:$0x75316420]
          %v415 = vpack.c.bf16 %v410, %v409
          %v416 = vpack.c.bf16 %v411, %v411
          %419 = vrot.lane.b32.xlu0 %v415, 15
          %v420 = vpop.permute.xlu0 %419
          %421 = vrot.lane.b32.xlu0 %v416, 15
          %v422 = vpop.permute.xlu0 %421
          %v423 = vrot.slane %v420, 4
          %v424 = vrot.slane %v422, 4
          %v425 = vsel %vm304, %v423, %v424
          %vm426 = vcmask 121856
          %v427 = vsel %vm426, %v420, %v425
          %429 = vst [vmem:[#allocation3 + $0x8] sm:$0x33] %v427
          %v430 = vld [vmem:[#allocation2] sm:$0x3f]
          %v431 = vld [vmem:[#allocation9] sm:$0x22]
          %v433 = vunpack.c.l.b16 %v431
          %v434 = vunpack.c.h.b16 %v431
          %v435 = vpack.c.b16 %v433, %v433
          %v436 = vpack.c.b16 %v434, %v434
          %v438 = vshrl.u32 %v435, 16
          %v439 = vpack.i.b16 %v438, %v438
          %v441 = vperm.slane %v439, 1
          %v443 = vshrl.u32 %v436, 16
          %v444 = vpack.i.b16 %v443, %v443
          %v446 = vperm.slane %v444, 1
          %v447 = vunpack.c.l.bf16 %v430
          %v448 = vunpack.c.h.bf16 %v430
          %v449 = vunpack.c.l.bf16 %v441
          %v450 = vunpack.c.l.bf16 %v446
          %v453 = vrot.slane %v450, 4
          %v454 = vsel %vm272, %v449, %v453
          %455 = vrot.lane.b32.xlu0 %v454, 127
          %v456 = vpop.permute.xlu0 %455
          %v457 = vrot.slane %v456, 4
          %vm458 = vcmask 1039360
          %v459 = vsel %vm458, %v457, %v456
          %v462 = vmul.f32 %v447, %v459
          %v463 = vmul.f32 %v448, %v457
          %466 = vst [vmem:[#allocation1] ss:$2 sm:$0xff] %v462
          %s467 = scalar_lea.vmem [#allocation1], 16
          %468 = vst [vmem:[%s467] ss:$2 sm:$0xff] %v463
          %v469 = vld.sshfl [vmem:[#allocation1] sm:$0xff pattern:$0x75316420]
          %v470 = vld.sshfl [vmem:[#allocation1 + $0x8] sm:$0xff pattern:$0x75316420]
          %v471 = vld.sshfl [vmem:[#allocation1 + $0x10] sm:$0xff pattern:$0x75316420]
          %v475 = vpack.c.bf16 %v470, %v469
          %v476 = vpack.c.bf16 %v471, %v471
          %v479 = vrot.slane %v475, 6
          %v480 = vrot.slane %v476, 6
          %481 = vrot.lane.b32.xlu0 %v479, 1
          %v482 = vpop.permute.xlu0 %481
          %483 = vrot.lane.b32.xlu0 %v480, 1
          %v484 = vpop.permute.xlu0 %483
          %v485 = vrot.slane %v482, 4
          %v486 = vrot.slane %v484, 4
          %v487 = vsel %vm304, %v485, %v486
          %vm488 = vcmask 7168
          %v489 = vsel %vm488, %v482, %v487
          %491 = vst [vmem:[#allocation3 + $0x8] sm:$0xcc] %v489
          %v492 = vld [vmem:[#allocation2 + $0x2] sm:$0xf]
          %494 = vst [vmem:[#allocation1] ss:$2 sm:$0xff] %v492
          %v495 = vld.sshfl [vmem:[#allocation1] sm:$0xff pattern:$0x75643120]
          %497 = vst [vmem:[#allocation3 + $0x10] sm:$0x33] %v495
          %v498 = vld [vmem:[#allocation2 + $0x2] sm:$0x3f]
          %v499 = vld [vmem:[#allocation9] sm:$0x44]
          %v501 = vunpack.c.l.b16 %v499
          %v502 = vunpack.c.h.b16 %v499
          %v503 = vpack.c.b16 %v501, %v501
          %v504 = vpack.c.b16 %v502, %v502
          %v506 = vshrl.u32 %v503, 16
          %v507 = vpack.i.b16 %v506, %v506
          %v509 = vperm.slane %v507, 2
          %v511 = vshrl.u32 %v504, 16
          %v512 = vpack.i.b16 %v511, %v511
          %v514 = vperm.slane %v512, 2
          %v515 = vunpack.c.l.bf16 %v498
          %v516 = vunpack.c.h.bf16 %v498
          %v517 = vunpack.c.l.bf16 %v509
          %v518 = vunpack.c.l.bf16 %v514
          %v521 = vrot.slane %v518, 4
          %v522 = vsel %vm272, %v517, %v521
          %523 = vrot.lane.b32.xlu0 %v522, 1
          %v524 = vpop.permute.xlu0 %523
          %v525 = vrot.slane %v524, 4
          %vm526 = vcmask 7168
          %v527 = vsel %vm526, %v525, %v524
          %v530 = vmul.f32 %v515, %v527
          %v531 = vmul.f32 %v516, %v525
          %534 = vst [vmem:[#allocation1] ss:$2 sm:$0xff] %v530
          %s535 = scalar_lea.vmem [#allocation1], 16
          %536 = vst [vmem:[%s535] ss:$2 sm:$0xff] %v531
          %v537 = vld.sshfl [vmem:[#allocation1] sm:$0xff pattern:$0x75316420]
          %v538 = vld.sshfl [vmem:[#allocation1 + $0x8] sm:$0xff pattern:$0x75316420]
          %v539 = vld.sshfl [vmem:[#allocation1 + $0x10] sm:$0xff pattern:$0x75316420]
          %v543 = vpack.c.bf16 %v538, %v537
          %v544 = vpack.c.bf16 %v539, %v539
          %v547 = vrot.slane %v543, 6
          %v548 = vrot.slane %v544, 6
          %549 = vrot.lane.b32.xlu0 %v547, 127
          %v550 = vpop.permute.xlu0 %549
          %551 = vrot.lane.b32.xlu0 %v548, 127
          %v552 = vpop.permute.xlu0 %551
          %v553 = vrot.slane %v550, 4
          %v554 = vrot.slane %v552, 4
          %v555 = vsel %vm304, %v553, %v554
          %vm556 = vcmask 1039360
          %v557 = vsel %vm556, %v550, %v555
          %559 = vst [vmem:[#allocation3 + $0x10] sm:$0xcc] %v557
          %v560 = vld [vmem:[#allocation2 + $0x2] sm:$0x3f]
          %v561 = vld [vmem:[#allocation9] sm:$0x88]
          %v563 = vunpack.c.l.b16 %v561
          %v564 = vunpack.c.h.b16 %v561
          %v565 = vpack.c.b16 %v563, %v563
          %v566 = vpack.c.b16 %v564, %v564
          %v568 = vpack.i.b16 %v565, %v565
          %v570 = vperm.slane %v568, 3
          %v572 = vpack.i.b16 %v566, %v566
          %v574 = vperm.slane %v572, 3
          %v575 = vunpack.c.l.bf16 %v560
          %v576 = vunpack.c.h.bf16 %v560
          %v577 = vunpack.c.l.bf16 %v570
          %v578 = vunpack.c.l.bf16 %v574
          %v581 = vrot.slane %v578, 4
          %v582 = vsel %vm272, %v577, %v581
          %583 = vrot.lane.b32.xlu0 %v582, 15
          %v584 = vpop.permute.xlu0 %583
          %v585 = vrot.slane %v584, 4
          %vm586 = vcmask 121856
          %v587 = vsel %vm586, %v585, %v584
          %v590 = vmul.f32 %v575, %v587
          %v591 = vmul.f32 %v576, %v585
          %594 = vst [vmem:[#allocation1] ss:$2 sm:$0xff] %v590
          %s595 = scalar_lea.vmem [#allocation1], 16
          %596 = vst [vmem:[%s595] ss:$2 sm:$0xff] %v591
          %v597 = vld.sshfl [vmem:[#allocation1] sm:$0xff pattern:$0x75316420]
          %v598 = vld.sshfl [vmem:[#allocation1 + $0x8] sm:$0xff pattern:$0x75316420]
          %v599 = vld.sshfl [vmem:[#allocation1 + $0x10] sm:$0xff pattern:$0x75316420]
          %v603 = vpack.c.bf16 %v598, %v597
          %v604 = vpack.c.bf16 %v599, %v599
          %607 = vrot.lane.b32.xlu0 %v603, 113
          %v608 = vpop.permute.xlu0 %607
          %609 = vrot.lane.b32.xlu0 %v604, 113
          %v610 = vpop.permute.xlu0 %609
          %v611 = vrot.slane %v608, 4
          %v612 = vrot.slane %v610, 4
          %v613 = vsel %vm304, %v611, %v612
          %vm614 = vcmask 924672
          %v615 = vsel %vm614, %v608, %v613
          %617 = vst [vmem:[#allocation3 + $0x18] sm:$0x33] %v615
          %v618 = vld [vmem:[#allocation2 + $0x2] sm:$0x3f]
          %v619 = vld [vmem:[#allocation9] sm:$0x88]
          %v621 = vunpack.c.l.b16 %v619
          %v622 = vunpack.c.h.b16 %v619
          %v623 = vpack.c.b16 %v621, %v621
          %v624 = vpack.c.b16 %v622, %v622
          %v626 = vshrl.u32 %v623, 16
          %v627 = vpack.i.b16 %v626, %v626
          %v629 = vperm.slane %v627, 3
          %v631 = vshrl.u32 %v624, 16
          %v632 = vpack.i.b16 %v631, %v631
          %v634 = vperm.slane %v632, 3
          %v635 = vunpack.c.l.bf16 %v618
          %v636 = vunpack.c.h.bf16 %v618
          %v637 = vunpack.c.l.bf16 %v629
          %v638 = vunpack.c.l.bf16 %v634
          %v641 = vrot.slane %v638, 4
          %v642 = vsel %vm272, %v637, %v641
          %643 = vrot.lane.b32.xlu0 %v642, 16
          %v644 = vpop.permute.xlu0 %643
          %v645 = vrot.slane %v644, 4
          %vm646 = vcmask 130048
          %v647 = vsel %vm646, %v645, %v644
          %v650 = vmul.f32 %v635, %v647
          %v651 = vmul.f32 %v636, %v645
          %654 = vst [vmem:[#allocation1] ss:$2 sm:$0xff] %v650
          %s655 = scalar_lea.vmem [#allocation1], 16
          %656 = vst [vmem:[%s655] ss:$2 sm:$0xff] %v651
          %v657 = vld.sshfl [vmem:[#allocation1] sm:$0xff pattern:$0x75316420]
          %v658 = vld.sshfl [vmem:[#allocation1 + $0x8] sm:$0xff pattern:$0x75316420]
          %v659 = vld.sshfl [vmem:[#allocation1 + $0x10] sm:$0xff pattern:$0x75316420]
          %v663 = vpack.c.bf16 %v658, %v657
          %v664 = vpack.c.bf16 %v659, %v659
          %v667 = vrot.slane %v663, 6
          %v668 = vrot.slane %v664, 6
          %669 = vrot.lane.b32.xlu0 %v667, 112
          %v670 = vpop.permute.xlu0 %669
          %671 = vrot.lane.b32.xlu0 %v668, 112
          %v672 = vpop.permute.xlu0 %671
          %v673 = vrot.slane %v670, 4
          %v674 = vrot.slane %v672, 4
          %v675 = vsel %vm304, %v673, %v674
          %vm676 = vcmask 916480
          %v677 = vsel %vm676, %v670, %v675
          %679 = vst [vmem:[#allocation3 + $0x18] sm:$0xcc] %v677
          %v680 = vld [vmem:[#allocation2 + $0x2] sm:$0x3f]
          %v681 = vld [vmem:[#allocation9 + $0x8] sm:$0x11]
          %v683 = vunpack.c.l.b16 %v681
          %v684 = vunpack.c.h.b16 %v681
          %v685 = vpack.c.b16 %v683, %v683
          %v686 = vpack.c.b16 %v684, %v684
          %v688 = vpack.i.b16 %v685, %v685
          %v690 = vperm.slane %v688, 0
          %v692 = vpack.i.b16 %v686, %v686
          %v694 = vperm.slane %v692, 0
          %v695 = vunpack.c.l.bf16 %v680
          %v696 = vunpack.c.h.bf16 %v680
          %v697 = vunpack.c.l.bf16 %v690
          %v698 = vunpack.c.l.bf16 %v694
          %v701 = vrot.slane %v698, 4
          %v702 = vsel %vm272, %v697, %v701
          %703 = vrot.lane.b32.xlu0 %v702, 17
          %v704 = vpop.permute.xlu0 %703
          %v705 = vrot.slane %v704, 4
          %vm706 = vcmask 138240
          %v707 = vsel %vm706, %v705, %v704
          %v710 = vmul.f32 %v695, %v707
          %v711 = vmul.f32 %v696, %v705
          %714 = vst [vmem:[#allocation1] ss:$2 sm:$0xff] %v710
          %s715 = scalar_lea.vmem [#allocation1], 16
          %716 = vst [vmem:[%s715] ss:$2 sm:$0xff] %v711
          %v717 = vld.sshfl [vmem:[#allocation1] sm:$0xff pattern:$0x75316420]
          %v718 = vld.sshfl [vmem:[#allocation1 + $0x8] sm:$0xff pattern:$0x75316420]
          %v719 = vld.sshfl [vmem:[#allocation1 + $0x10] sm:$0xff pattern:$0x75316420]
          %v723 = vpack.c.bf16 %v718, %v717
          %v724 = vpack.c.bf16 %v719, %v719
          %727 = vrot.lane.b32.xlu0 %v723, 111
          %v728 = vpop.permute.xlu0 %727
          %729 = vrot.lane.b32.xlu0 %v724, 111
          %v730 = vpop.permute.xlu0 %729
          %v731 = vrot.slane %v728, 4
          %v732 = vrot.slane %v730, 4
          %v733 = vsel %vm304, %v731, %v732
          %vm734 = vcmask 908288
          %v735 = vsel %vm734, %v728, %v733
          %737 = vst [vmem:[#allocation3 + $0x20] sm:$0x33] %v735
        $region48: #{tpu_custom_call.1} parent=31 // pred_fallthru
          _
        %v738 = vld [vmem:[#allocation7] sm:$0xf]
        %v739 = vld [vmem:[#allocation3] sm:$0xff]
        %v740 = vld [vmem:[#allocation3 + $0x8] sm:$0xff]
        %v741 = vld [vmem:[#allocation3 + $0x10] sm:$0xff]
        %v742 = vld [vmem:[#allocation3 + $0x18] sm:$0xff]
        %v743 = vld [vmem:[#allocation3 + $0x20] sm:$0x33]
        %v749 = vunpack.c.l.b16 %v739
        %v750 = vunpack.c.h.b16 %v739
        %v751 = vunpack.c.l.b16 %v740
        %v752 = vunpack.c.h.b16 %v740
        %v753 = vunpack.c.l.b16 %v741
        %v754 = vunpack.c.h.b16 %v741
        %v755 = vunpack.c.l.b16 %v742
        %v756 = vunpack.c.h.b16 %v742
        %v757 = vunpack.c.l.b16 %v743
        %v758 = vunpack.c.h.b16 %v743
        %v759 = vpack.c.b16 %v751, %v749
        %v760 = vpack.c.b16 %v752, %v750
        %v761 = vpack.c.b16 %v755, %v753
        %v762 = vpack.c.b16 %v756, %v754
        %v763 = vpack.c.b16 %v757, %v757
        %v764 = vpack.c.b16 %v758, %v758
        %vm769 = vcmask 293888
        %v771 = vsel %vm769, %v738, 0
        %vm773 = vcmask 1041408
        %v775 = vsel %vm773, %v763, 0
        %v778 = vsel %vm773, %v764, 0
        %780 = vmatpush.bf16.msra.mxu0 0
        %781 = vmatpush.bf16.msra.mxu0 0
        %782 = vmatpush.bf16.msra.mxu0 0
        %783 = vmatpush.bf16.msra.mxu0 0
        %784 = vmatpush.bf16.msra.mxu0 0
        %785 = vmatpush.bf16.msra.mxu0 %v775
        %786 = vmatpush.bf16.msra.mxu0 %v761
        %787 = vmatpush.bf16.msra.mxu0 %v759
        %788 = vmatmul.bf16.gmra.mxu0 %v771
        %v789 = vpop.f32.mrf.mxu0
        %v790 = vadd.f32 0.0, %v789
        %v791 = vpop.f32.mrf.mxu0
        %792 = vdwg.mxu0
        %793 = vmatpush.bf16.msra.mxu0 0
        %794 = vmatpush.bf16.msra.mxu0 0
        %795 = vmatpush.bf16.msra.mxu0 0
        %796 = vmatpush.bf16.msra.mxu0 0
        %797 = vmatpush.bf16.msra.mxu0 0
        %798 = vmatpush.bf16.msra.mxu0 %v778
        %799 = vmatpush.bf16.msra.mxu0 %v762
        %800 = vmatpush.bf16.msra.mxu0 %v760
        %801 = vmatmul.bf16.gmra.mxu0 %v771
        %v802 = vpop.f32.mrf.mxu0
        %v803 = vadd.f32 0.0, %v802
        %v804 = vpop.f32.mrf.mxu0
        %805 = vdwg.mxu0
        %806 = vst [vmem:[%s240] sm:$0xff] %v790
        %807 = vst [vmem:[%s240 + $0x8] sm:$0xff] %v803
        %s808 = sand.u32 %s116, 1
        %s809 = scalar_lea.sflag [#allocation6], %s808
        %s810 = sand.u32 %s116, 1
        %s811 = smul.addr %s810, 16
        %s812 = scalar_lea.vmem [#allocation10], %s811
        // Predicated region
        $region49: #{tpu_custom_call.1} parent=31 // pred_check
          %p813 = pneg %p126
        $region50: #{tpu_custom_call.1} parent=31 // pred_check_branch
          %815 = sbr.rel (%p813) target = $region52
        $region51: #{tpu_custom_call.1} parent=31 // pred_region
          %817 = vsyncadd %s809, 0
          %s818 = smul.addr %s26, 2
          %s819 = smul.addr %s25, 2
          %s820 = sadd.s32 %s818, %s819
          %s821 = smul.addr %s820, 8
          %s822 = scalar_lea.hbm %s3, %s821
          %s824 = sshll.u32 %s812, 4
          %s825 = int_to_ptr.vmem [resolvable:$true] %s824
          %s826 = sshll.u32 %s822, 4
          %s827 = int_to_ptr.hbm [resolvable:$true] %s826
          %829 = dma.vmem_to_hbm [thread:$0]  %s825, 256, %s827, %s809
        $region52: #{tpu_custom_call.1} parent=31 // pred_fallthru
          _
      $region32: #{tpu_custom_call.1} parent=5 // pred_fallthru
        _
      %p830 = scmp.le.s32.totalorder 2, %s16
      // Predicated region
      $region53: #{tpu_custom_call.1} parent=5 // pred_check
        %p831 = pneg %p830
      $region54: #{tpu_custom_call.1} parent=5 // pred_check_branch
        %833 = sbr.rel (%p831) target = $region56
      $region55: #{tpu_custom_call.1} parent=5 // pred_region
        %s834 = ssub.s32 %s16, 2
        // Predicated region
        $region57: #{tpu_custom_call.1} parent=55 // pred_check
          %p835 = pneg %p132
        $region58: #{tpu_custom_call.1} parent=55 // pred_check_branch
          %837 = sbr.rel (%p835) target = $region60
        $region59: #{tpu_custom_call.1} parent=55 // pred_region
          %s838 = sand.u32 %s117, 1
          %s839 = scalar_lea.sflag [#allocation6], %s838
          %s840 = sand.u32 %s117, 1
          %s841 = smul.addr %s840, 16
          %s842 = scalar_lea.vmem [#allocation10], %s841
          %844 = dma.done %s839, 256
        $region60: #{tpu_custom_call.1} parent=55 // pred_fallthru
          _
      $region56: #{tpu_custom_call.1} parent=5 // pred_fallthru
        _
    $region6: #{tpu_custom_call.1} parent=1 // loop_footer
      %s20 = sadd.s32 1, %s16
    $region7: #{tpu_custom_call.1} parent=1 // loop_footer_branch
      %15 = sbr.rel target = $region3
    $region8: #{tpu_custom_call.1} parent=1 // loop_exit
      _
    %845 = vsyncpa [#allocation5], 1
    %s846 = scalar_lea.sflag [#allocation5], 1
    %847 = vsyncpa %s846, 1
    %848 = vsyncpa [#allocation8], 1
    %849 = vsyncpa [#allocation6], 1
    %s850 = scalar_lea.sflag [#allocation6], 1
    %851 = vsyncpa %s850, 1

</llo_original>
